<compile_context>
chip_gen: v5e
topology: v5e:2x2
jax: 0.10.0
libtpu: 0.0.40
codegen_flags: <defaults>
</compile_context>

<pallas_src>
import functools

import jax
import jax.numpy as jnp
from jax.experimental import pallas as pl
from jax.experimental.pallas import tpu as pltpu


# ----------------------------------------------------------------------------
# Pallas kernel (one block of BBLK batch elements per grid step)
# ----------------------------------------------------------------------------
def _ranking_kernel(u_ref, t_ref, q_ref, mask_ref,
                    wa_ref, wq_ref, bin_ref, w3_ref, b3_ref, weff_ref,
                    num_ref, *, U, BBLK):
    # u_ref    : (BBLK*U, D)  candidate-user rows (row-major: batch-major, U-minor)
    # t_ref    : (BBLK, D)    top_user rows
    # q_ref    : (BBLK, D)    question rows
    # mask_ref : (BBLK*U, 1)  1.0 where uid != 0 (0.0 also for batch padding)
    wa = wa_ref[...]          # (D, C)   C = 3*F1
    wq = wq_ref[...]          # (D, C)
    b_in = bin_ref[...]       # (1, C)
    w3 = w3_ref[...]          # (C, F2)
    b3 = b3_ref[...]          # (1, F2)
    weff = weff_ref[...]      # (1, F2)
    C = wa.shape[1]

    u = u_ref[...].astype(jnp.float32)
    t = t_ref[...].astype(jnp.float32)
    q = q_ref[...].astype(jnp.float32)

    # Question-path conv work: computed ONCE per batch element, shared by the
    # low path (U rows) and the high path (1 row).
    q_conv = jnp.dot(q, wq, preferred_element_type=jnp.float32)           # (BBLK, C)

    # ---- high path (top_user), one row per batch element --------------------
    t_conv = jnp.dot(t, wa, preferred_element_type=jnp.float32)           # (BBLK, C)
    r_hi = jnp.maximum(t_conv + q_conv + b_in, 0.0)
    y_hi = jnp.maximum(
        jnp.dot(r_hi, w3, preferred_element_type=jnp.float32) + b3, 0.0)  # (BBLK, F2)
    s_hi = jnp.sum(y_hi * weff, axis=1, keepdims=True)                    # (BBLK, 1)

    # ---- low path (candidate users), BBLK*U rows -----------------------------
    a_conv = jnp.dot(u, wa, preferred_element_type=jnp.float32)           # (BBLK*U, C)
    q_rep = jnp.broadcast_to(q_conv[:, None, :],
                             (BBLK, U, C)).reshape(BBLK * U, C)           # share q work
    r_lo = jnp.maximum(a_conv + q_rep + b_in, 0.0)
    y_lo = jnp.maximum(
        jnp.dot(r_lo, w3, preferred_element_type=jnp.float32) + b3, 0.0)  # (BBLK*U, F2)
    s_lo = jnp.sum(y_lo * weff, axis=1, keepdims=True)                    # (BBLK*U, 1)

    # ---- masked pairwise hinge, one partial sum per block --------------------
    s_hi_rep = jnp.broadcast_to(s_hi[:, None, :],
                                (BBLK, U, 1)).reshape(BBLK * U, 1)
    diff = jnp.maximum(s_lo - s_hi_rep, 0.0) * mask_ref[...]              # (BBLK*U, 1)
    num_ref[...] = jnp.sum(diff, axis=0, keepdims=True)                   # (1, 1)


# ----------------------------------------------------------------------------
# Dimension / parameter helpers
# ----------------------------------------------------------------------------
def derive_dims(D, K1):
    F1 = D - K1 + 1            # conv_features_size
    K2 = F1 // 2 + 1           # kernel_2
    F2 = F1 - K2 + 1           # features_for_NN
    H1 = F2 // 2               # fc_new_1 out features
    return dict(K1=K1, K2=K2, F1=F1, F2=F2, H1=H1)


def init_params(key, D, K1, cnn_channel=1):
    assert cnn_channel == 1, "conv3 has in_channels=1, so cnn_channel must be 1"
    dims = derive_dims(D, K1)
    K2, F2, H1 = dims["K2"], dims["F2"], dims["H1"]
    ks = jax.random.split(key, 6)

    def kaiming(k, shape, fan_out):
        return jax.random.normal(k, shape, jnp.float32) * jnp.sqrt(2.0 / fan_out)

    def xavier(k, shape, fan_in, fan_out):
        return jax.random.normal(k, shape, jnp.float32) * jnp.sqrt(2.0 / (fan_in + fan_out))

    params = {
        "w1": kaiming(ks[0], (K1,), 1 * 1 * K1),           # Conv2d(1,1,(1,K1))
        "b1": jnp.zeros((1,), jnp.float32),
        "w2": kaiming(ks[1], (2 * K1,), 1 * 2 * K1),       # Conv2d(1,1,(2,K1))
        "b2": jnp.zeros((1,), jnp.float32),
        "w3": kaiming(ks[2], (3 * K2,), 1 * 3 * K2),       # Conv2d(1,1,(3,K2))
        "b3": jnp.zeros((1,), jnp.float32),
        "fw1": xavier(ks[3], (H1 * F2,), F2, H1),          # Linear(F2, H1)
        "fb1": jnp.zeros((H1,), jnp.float32),
        "fw2": xavier(ks[4], (4 * H1,), H1, 4),            # Linear(H1, 4)
        "fb2": jnp.zeros((4,), jnp.float32),
        "fw3": xavier(ks[5], (4,), 4, 1),                  # Linear(4, 1)
        "fb3": jnp.zeros((1,), jnp.float32),
    }
    return params, dims


def _band_matrix(w, in_len):
    """(in_len, F) matrix T with T[d, f] = w[d - f] (valid cross-correlation)."""
    K = w.shape[0]
    F = in_len - K + 1
    d = jnp.arange(in_len)[:, None]
    f = jnp.arange(F)[None, :]
    idx = d - f
    valid = (idx >= 0) & (idx < K)
    return jnp.where(valid, w[jnp.clip(idx, 0, K - 1)], 0.0).astype(jnp.float32)


def _pack_weights(params, dims, D):
    """Trace-time repacking of conv/FC weights into MXU-friendly matrices."""
    K1, K2, F1, F2, H1 = dims["K1"], dims["K2"], dims["F1"], dims["F2"], dims["H1"]

    T1 = _band_matrix(params["w1"], D)                     # conv1 kernel   (D, F1)
    T2a = _band_matrix(params["w2"][:K1], D)               # conv2, row a   (D, F1)
    T2b = _band_matrix(params["w2"][K1:], D)               # conv2, row q   (D, F1)
    zero = jnp.zeros((D, F1), jnp.float32)

    # [user/top] row contributions -> columns [r0 | r1 | r2]
    w_a = jnp.concatenate([T1, zero, T2a], axis=1)         # (D, 3*F1)
    # question row contributions -> columns [r0 | r1 | r2]
    w_q = jnp.concatenate([zero, T1, T2b], axis=1)         # (D, 3*F1)

    b1 = params["b1"][0]
    b2 = params["b2"][0]
    b_in = jnp.concatenate([jnp.full((F1,), b1, jnp.float32),
                            jnp.full((F1,), b1, jnp.float32),
                            jnp.full((F1,), b2, jnp.float32)]).reshape(1, 3 * F1)

    w3_band = jnp.concatenate(
        [_band_matrix(params["w3"][i * K2:(i + 1) * K2], F1) for i in range(3)],
        axis=0)                                            # (3*F1, F2)
    b3v = jnp.full((1, F2), params["b3"][0], jnp.float32)

    # Fold the activation-free FC chain fc_new_1/2/3 into one (1, F2) vector.
    # (The combined FC bias is constant across samples and cancels in low-high.)
    W1m = params["fw1"].reshape(H1, F2)
    W2m = params["fw2"].reshape(4, H1)
    W3m = params["fw3"].reshape(1, 4)
    w_eff = jnp.matmul(jnp.matmul(W3m, W2m, precision="highest"),
                       W1m, precision="highest")           # (1, F2)

    return w_a, w_q, b_in, w3_band, b3v, w_eff


# ----------------------------------------------------------------------------
# Forward wrapper
# ----------------------------------------------------------------------------
def ranking_model_forward(params, dims, users, top_user, question, uids,
                          neg_users=None, *, block_b=512,
                          input_dtype=jnp.float32):
    # neg_users is accepted for signature parity but (as in PyTorch) unused.
    del neg_users
    B, U, D = users.shape
    F1, F2 = dims["F1"], dims["F2"]
    C = 3 * F1

    w_a, w_q, b_in, w3_band, b3v, w_eff = _pack_weights(params, dims, D)

    # Batch blocking: whole problem in one grid step when B is modest, else
    # blocks of `block_b` (multiple of 8 so (8,128) tiling is respected).
    # ~ (U+1)*D + 3*F1*(U+1)*2 f32 of VMEM per batch element; block_b=512 is
    # far below the default scoped-VMEM limit for typical embedding dims.
    if B <= block_b:
        bblk, b_pad = B, B
    else:
        bblk = block_b
        b_pad = ((B + bblk - 1) // bblk) * bblk
    nb = b_pad // bblk

    mask = (uids != 0).astype(jnp.float32)                  # (B, U)
    users_c = users.astype(input_dtype)
    top_c = top_user.astype(input_dtype)
    q_c = question.astype(input_dtype)

    if b_pad != B:
        pad = b_pad - B
        users_c = jnp.pad(users_c, ((0, pad), (0, 0), (0, 0)))
        top_c = jnp.pad(top_c, ((0, pad), (0, 0)))
        q_c = jnp.pad(q_c, ((0, pad), (0, 0)))
        mask = jnp.pad(mask, ((0, pad), (0, 0)))             # padded rows masked out

    users_flat = users_c.reshape(b_pad * U, D)               # leading-dim collapse (cheap)
    mask_flat = mask.reshape(b_pad * U, 1)

    kernel = functools.partial(_ranking_kernel, U=U, BBLK=bblk)

    in_specs = [
        pl.BlockSpec((bblk * U, D), lambda b: (b, 0)),        # users (flattened)
        pl.BlockSpec((bblk, D), lambda b: (b, 0)),            # top_user
        pl.BlockSpec((bblk, D), lambda b: (b, 0)),            # question
        pl.BlockSpec((bblk * U, 1), lambda b: (b, 0)),        # mask
        pl.BlockSpec((D, C), lambda b: (0, 0)),               # w_a   (resident)
        pl.BlockSpec((D, C), lambda b: (0, 0)),               # w_q
        pl.BlockSpec((1, C), lambda b: (0, 0)),               # b_in
        pl.BlockSpec((C, F2), lambda b: (0, 0)),              # w3_band
        pl.BlockSpec((1, F2), lambda b: (0, 0)),              # b3
        pl.BlockSpec((1, F2), lambda b: (0, 0)),              # w_eff
    ]
    out_specs = pl.BlockSpec((None, 1, 1), lambda b: (b, 0, 0))   # one partial per block

    num = pl.pallas_call(
        kernel,
        grid=(nb,),
        in_specs=in_specs,
        out_specs=out_specs,
        out_shape=jax.ShapeDtypeStruct((nb, 1, 1), jnp.float32),
        compiler_params=pltpu.CompilerParams(dimension_semantics=("parallel",)),
    )(users_flat, top_c, q_c, mask_flat, w_a, w_q, b_in, w3_band, b3v, w_eff)

    # den depends only on uids -> plain JAX; final divide also in JAX.
    # relu(masked_select(low - high)).mean() == sum(relu(diff)*mask) / sum(mask)
    den = jnp.sum((uids != 0).astype(jnp.float32))
    return jnp.sum(num) / den


# ----------------------------------------------------------------------------
# Pure-JAX reference (mirrors the PyTorch forward) for a sanity check
# ----------------------------------------------------------------------------
def reference_loss(params, dims, users, top_user, question, uids):
    B, U, D = users.shape
    N = B * U
    K1, K2, F2, H1 = dims["K1"], dims["K2"], dims["F2"], dims["H1"]
    a_low = users.reshape(N, D)
    q = jnp.broadcast_to(question[:, None, :], (B, U, D)).reshape(N, D)
    a_high = jnp.broadcast_to(top_user[:, None, :], (B, U, D)).reshape(N, D)

    def conv1d(x, w):
        K = w.shape[0]
        F = x.shape[1] - K + 1
        win = jnp.stack([x[:, k:k + F] for k in range(K)], axis=-1)
        return jnp.einsum("nfk,k->nf", win, w, precision="highest")

    def score(a, b):
        w1 = params["w1"]
        w2 = params["w2"].reshape(2, K1)
        w3 = params["w3"].reshape(3, K2)
        r0 = jax.nn.relu(conv1d(a, w1) + params["b1"][0])
        r1 = jax.nn.relu(conv1d(b, w1) + params["b1"][0])
        r2 = jax.nn.relu(conv1d(a, w2[0]) + conv1d(b, w2[1]) + params["b2"][0])
        y = jax.nn.relu(conv1d(r0, w3[0]) + conv1d(r1, w3[1]) + conv1d(r2, w3[2])
                        + params["b3"][0])
        h = jnp.matmul(y, params["fw1"].reshape(H1, F2).T, precision="highest") + params["fb1"]
        h = jnp.matmul(h, params["fw2"].reshape(4, H1).T, precision="highest") + params["fb2"]
        s = jnp.matmul(h, params["fw3"].reshape(1, 4).T, precision="highest") + params["fb3"]
        return s[:, 0]

    low = score(a_low, q)
    high = score(a_high, q)
    mask = (uids != 0).astype(jnp.float32).reshape(N)
    diff = jax.nn.relu(low - high)
    return jnp.sum(diff * mask) / jnp.sum(mask)


# ----------------------------------------------------------------------------
if __name__ == "__main__":
    B, U, D, K1 = 2, 8, 16, 5          # embedding_dim=16, kernel_1=5, cnn_channel=1

    key = jax.random.PRNGKey(0)
    kp, ku, kt, kq, kid, kn = jax.random.split(key, 6)

    params, dims = init_params(kp, D, K1, cnn_channel=1)

    users = jax.random.normal(ku, (B, U, D), jnp.float32)
    top_user = jax.random.normal(kt, (B, D), jnp.float32)
    question = jax.random.normal(kq, (B, D), jnp.float32)
    uids = jax.random.randint(kid, (B, U), 0, 3).astype(jnp.int32)
    uids = uids.at[:, 0].set(1)        # guarantee at least one valid entry per batch
    neg_users = jax.random.normal(kn, (B, U, D), jnp.float32)  # unused (as in PyTorch)

    # f32 inputs: tight check against the pure-JAX reference
    loss = ranking_model_forward(params, dims, users, top_user, question, uids,
                                 neg_users, input_dtype=jnp.float32)
    loss = jax.block_until_ready(loss)
    ref = reference_loss(params, dims, users, top_user, question, uids)
    if not jnp.allclose(loss, ref, rtol=1e-3, atol=1e-5):
        raise AssertionError(f"f32 mismatch: pallas={loss}, reference={ref}")

    # bf16 inputs (halves HBM traffic on v5e/v6e/v7x): compare against the
    # reference evaluated on the same bf16-rounded inputs.
    loss_bf16 = ranking_model_forward(params, dims, users, top_user, question, uids,
                                      neg_users, input_dtype=jnp.bfloat16)
    loss_bf16 = jax.block_until_ready(loss_bf16)
    rnd = lambda a: a.astype(jnp.bfloat16).astype(jnp.float32)
    ref_bf16 = reference_loss(params, dims, rnd(users), rnd(top_user), rnd(question), uids)
    if not jnp.allclose(loss_bf16, ref_bf16, rtol=2e-2, atol=1e-3):
        raise AssertionError(f"bf16 mismatch: pallas={loss_bf16}, reference={ref_bf16}")

    print("KERNEL_OK")
</pallas_src>

<mosaic_0001>
module attributes {stable_mosaic.version = 11 : i64} {
  func.func @_ranking_kernel(%arg0: i32, %arg1: memref<16x16xf32, #tpu.memory_space<vmem>>, %arg2: memref<2x16xf32, #tpu.memory_space<vmem>>, %arg3: memref<2x16xf32, #tpu.memory_space<vmem>>, %arg4: memref<16x1xf32, #tpu.memory_space<vmem>>, %arg5: memref<16x36xf32, #tpu.memory_space<vmem>>, %arg6: memref<16x36xf32, #tpu.memory_space<vmem>>, %arg7: memref<1x36xf32, #tpu.memory_space<vmem>>, %arg8: memref<36x6xf32, #tpu.memory_space<vmem>>, %arg9: memref<1x6xf32, #tpu.memory_space<vmem>>, %arg10: memref<1x6xf32, #tpu.memory_space<vmem>>, %arg11: memref<1x1x1xf32, #tpu.memory_space<vmem>>) attributes {dimension_semantics = [#tpu.dimension_semantics<parallel>], iteration_bounds = array<i64: 1>, scalar_prefetch = 0 : i64, scratch_operands = 0 : i64, tpu.core_type = #tpu.core_type<tc>, window_params = [{transform_indices = @transform_0, window_bounds = array<i64: 16, 16>}, {transform_indices = @transform_1, window_bounds = array<i64: 2, 16>}, {transform_indices = @transform_2, window_bounds = array<i64: 2, 16>}, {transform_indices = @transform_3, window_bounds = array<i64: 16, 1>}, {pipeline_mode = #tpu.pipeline_mode<synchronous>, transform_indices = @transform_4, window_bounds = array<i64: 16, 36>}, {pipeline_mode = #tpu.pipeline_mode<synchronous>, transform_indices = @transform_5, window_bounds = array<i64: 16, 36>}, {pipeline_mode = #tpu.pipeline_mode<synchronous>, transform_indices = @transform_6, window_bounds = array<i64: 1, 36>}, {pipeline_mode = #tpu.pipeline_mode<synchronous>, transform_indices = @transform_7, window_bounds = array<i64: 36, 6>}, {pipeline_mode = #tpu.pipeline_mode<synchronous>, transform_indices = @transform_8, window_bounds = array<i64: 1, 6>}, {pipeline_mode = #tpu.pipeline_mode<synchronous>, transform_indices = @transform_9, window_bounds = array<i64: 1, 6>}, {transform_indices = @transform_10, window_bounds = array<i64: 1, 1, 1>}]} {
    %c0 = arith.constant 0 : index
    %c0_0 = arith.constant 0 : index
    %0 = vector.load %arg5[%c0, %c0_0] : memref<16x36xf32, #tpu.memory_space<vmem>>, vector<16x36xf32>
    %c0_1 = arith.constant 0 : index
    %c0_2 = arith.constant 0 : index
    %1 = vector.load %arg6[%c0_1, %c0_2] : memref<16x36xf32, #tpu.memory_space<vmem>>, vector<16x36xf32>
    %c0_3 = arith.constant 0 : index
    %c0_4 = arith.constant 0 : index
    %2 = vector.load %arg7[%c0_3, %c0_4] : memref<1x36xf32, #tpu.memory_space<vmem>>, vector<1x36xf32>
    %c0_5 = arith.constant 0 : index
    %c0_6 = arith.constant 0 : index
    %3 = vector.load %arg8[%c0_5, %c0_6] : memref<36x6xf32, #tpu.memory_space<vmem>>, vector<36x6xf32>
    %c0_7 = arith.constant 0 : index
    %c0_8 = arith.constant 0 : index
    %4 = vector.load %arg9[%c0_7, %c0_8] : memref<1x6xf32, #tpu.memory_space<vmem>>, vector<1x6xf32>
    %c0_9 = arith.constant 0 : index
    %c0_10 = arith.constant 0 : index
    %5 = vector.load %arg10[%c0_9, %c0_10] : memref<1x6xf32, #tpu.memory_space<vmem>>, vector<1x6xf32>
    %c0_11 = arith.constant 0 : index
    %c0_12 = arith.constant 0 : index
    %6 = vector.load %arg1[%c0_11, %c0_12] : memref<16x16xf32, #tpu.memory_space<vmem>>, vector<16x16xf32>
    %c0_13 = arith.constant 0 : index
    %c0_14 = arith.constant 0 : index
    %7 = vector.load %arg2[%c0_13, %c0_14] : memref<2x16xf32, #tpu.memory_space<vmem>>, vector<2x16xf32>
    %c0_15 = arith.constant 0 : index
    %c0_16 = arith.constant 0 : index
    %8 = vector.load %arg3[%c0_15, %c0_16] : memref<2x16xf32, #tpu.memory_space<vmem>>, vector<2x16xf32>
    %cst = arith.constant dense<0.000000e+00> : vector<2x36xf32>
    %9 = tpu.matmul %8, %1, %cst {dimension_numbers = #tpu.dot_dimension_numbers<[1], [0], [0], [1], [0, 0, 1, 1], [], []>} : vector<2x16xf32>, vector<16x36xf32>, vector<2x36xf32> -> vector<2x36xf32>
    %cst_17 = arith.constant dense<0.000000e+00> : vector<2x36xf32>
    %10 = tpu.matmul %7, %0, %cst_17 {dimension_numbers = #tpu.dot_dimension_numbers<[1], [0], [0], [1], [0, 0, 1, 1], [], []>} : vector<2x16xf32>, vector<16x36xf32>, vector<2x36xf32> -> vector<2x36xf32>
    %11 = arith.addf %10, %9 : vector<2x36xf32>
    %12 = vector.broadcast %2 : vector<1x36xf32> to vector<2x36xf32>
    %13 = arith.addf %11, %12 : vector<2x36xf32>
    %cst_18 = arith.constant 0.000000e+00 : f32
    %14 = vector.broadcast %cst_18 : f32 to vector<2x36xf32>
    %15 = arith.maximumf %13, %14 : vector<2x36xf32>
    %cst_19 = arith.constant dense<0.000000e+00> : vector<2x6xf32>
    %16 = tpu.matmul %15, %3, %cst_19 {dimension_numbers = #tpu.dot_dimension_numbers<[1], [0], [0], [1], [0, 0, 1, 1], [], []>} : vector<2x36xf32>, vector<36x6xf32>, vector<2x6xf32> -> vector<2x6xf32>
    %17 = vector.broadcast %4 : vector<1x6xf32> to vector<2x6xf32>
    %18 = arith.addf %16, %17 : vector<2x6xf32>
    %cst_20 = arith.constant 0.000000e+00 : f32
    %19 = vector.broadcast %cst_20 : f32 to vector<2x6xf32>
    %20 = arith.maximumf %18, %19 : vector<2x6xf32>
    %21 = vector.broadcast %5 : vector<1x6xf32> to vector<2x6xf32>
    %22 = arith.mulf %20, %21 : vector<2x6xf32>
    %cst_21 = arith.constant dense<0.000000e+00> : vector<2xf32>
    %23 = vector.multi_reduction <add>, %22, %cst_21 [1] : vector<2x6xf32> to vector<2xf32>
    %24 = vector.shape_cast %23 : vector<2xf32> to vector<2x1xf32>
    %cst_22 = arith.constant dense<0.000000e+00> : vector<16x36xf32>
    %25 = tpu.matmul %6, %0, %cst_22 {dimension_numbers = #tpu.dot_dimension_numbers<[1], [0], [0], [1], [0, 0, 1, 1], [], []>} : vector<16x16xf32>, vector<16x36xf32>, vector<16x36xf32> -> vector<16x36xf32>
    %26 = vector.shape_cast %9 : vector<2x36xf32> to vector<2x1x36xf32>
    %27 = vector.shape_cast %26 : vector<2x1x36xf32> to vector<2x1x36xf32>
    %28 = vector.broadcast %27 : vector<2x1x36xf32> to vector<2x8x36xf32>
    %29 = vector.shape_cast %28 : vector<2x8x36xf32> to vector<16x36xf32>
    %30 = arith.addf %25, %29 : vector<16x36xf32>
    %31 = vector.broadcast %2 : vector<1x36xf32> to vector<16x36xf32>
    %32 = arith.addf %30, %31 : vector<16x36xf32>
    %cst_23 = arith.constant 0.000000e+00 : f32
    %33 = vector.broadcast %cst_23 : f32 to vector<16x36xf32>
    %34 = arith.maximumf %32, %33 : vector<16x36xf32>
    %cst_24 = arith.constant dense<0.000000e+00> : vector<16x6xf32>
    %35 = tpu.matmul %34, %3, %cst_24 {dimension_numbers = #tpu.dot_dimension_numbers<[1], [0], [0], [1], [0, 0, 1, 1], [], []>} : vector<16x36xf32>, vector<36x6xf32>, vector<16x6xf32> -> vector<16x6xf32>
    %36 = vector.broadcast %4 : vector<1x6xf32> to vector<16x6xf32>
    %37 = arith.addf %35, %36 : vector<16x6xf32>
    %cst_25 = arith.constant 0.000000e+00 : f32
    %38 = vector.broadcast %cst_25 : f32 to vector<16x6xf32>
    %39 = arith.maximumf %37, %38 : vector<16x6xf32>
    %40 = vector.broadcast %5 : vector<1x6xf32> to vector<16x6xf32>
    %41 = arith.mulf %39, %40 : vector<16x6xf32>
    %cst_26 = arith.constant dense<0.000000e+00> : vector<16xf32>
    %42 = vector.multi_reduction <add>, %41, %cst_26 [1] : vector<16x6xf32> to vector<16xf32>
    %43 = vector.shape_cast %42 : vector<16xf32> to vector<16x1xf32>
    %44 = vector.shape_cast %24 : vector<2x1xf32> to vector<2x1x1xf32>
    %45 = vector.shape_cast %44 : vector<2x1x1xf32> to vector<2x1x1xf32>
    %46 = vector.broadcast %45 : vector<2x1x1xf32> to vector<2x8x1xf32>
    %47 = vector.shape_cast %46 : vector<2x8x1xf32> to vector<16x1xf32>
    %48 = arith.subf %43, %47 : vector<16x1xf32>
    %cst_27 = arith.constant 0.000000e+00 : f32
    %49 = vector.broadcast %cst_27 : f32 to vector<16x1xf32>
    %50 = arith.maximumf %48, %49 : vector<16x1xf32>
    %c0_28 = arith.constant 0 : index
    %c0_29 = arith.constant 0 : index
    %51 = vector.load %arg4[%c0_28, %c0_29] : memref<16x1xf32, #tpu.memory_space<vmem>>, vector<16x1xf32>
    %52 = arith.mulf %50, %51 : vector<16x1xf32>
    %cst_30 = arith.constant dense<0.000000e+00> : vector<1xf32>
    %53 = vector.multi_reduction <add>, %52, %cst_30 [0] : vector<16x1xf32> to vector<1xf32>
    %54 = vector.shape_cast %53 : vector<1xf32> to vector<1x1xf32>
    %c0_31 = arith.constant 0 : index
    %c0_32 = arith.constant 0 : index
    %c0_33 = arith.constant 0 : index
    %55 = vector.load %arg11[%c0_31, %c0_32, %c0_33] : memref<1x1x1xf32, #tpu.memory_space<vmem>>, vector<1x1x1xf32>
    %56 = vector.shape_cast %55 : vector<1x1x1xf32> to vector<1x1xf32>
    %57 = vector.shape_cast %54 : vector<1x1xf32> to vector<1x1x1xf32>
    tpu.vector_store %arg11[%c0_31, %c0_32, %c0_33], %57 {strides = array<i32>} : memref<1x1x1xf32, #tpu.memory_space<vmem>>, vector<1x1x1xf32>,
    return
  }
  func.func @transform_0(%arg0: i32) -> (i32, i32) {
    %c0_i32 = arith.constant 0 : i32
    %c0_i32_0 = arith.constant 0 : i32
    return %arg0, %c0_i32 : i32, i32
  }
  func.func @transform_1(%arg0: i32) -> (i32, i32) {
    %c0_i32 = arith.constant 0 : i32
    %c0_i32_0 = arith.constant 0 : i32
    return %arg0, %c0_i32 : i32, i32
  }
  func.func @transform_2(%arg0: i32) -> (i32, i32) {
    %c0_i32 = arith.constant 0 : i32
    %c0_i32_0 = arith.constant 0 : i32
    return %arg0, %c0_i32 : i32, i32
  }
  func.func @transform_3(%arg0: i32) -> (i32, i32) {
    %c0_i32 = arith.constant 0 : i32
    %c0_i32_0 = arith.constant 0 : i32
    return %arg0, %c0_i32 : i32, i32
  }
  func.func @transform_4(%arg0: i32) -> (i32, i32) {
    %c0_i32 = arith.constant 0 : i32
    %c0_i32_0 = arith.constant 0 : i32
    %c0_i32_1 = arith.constant 0 : i32
    return %c0_i32, %c0_i32_0 : i32, i32
  }
  func.func @transform_5(%arg0: i32) -> (i32, i32) {
    %c0_i32 = arith.constant 0 : i32
    %c0_i32_0 = arith.constant 0 : i32
    %c0_i32_1 = arith.constant 0 : i32
    return %c0_i32, %c0_i32_0 : i32, i32
  }
  func.func @transform_6(%arg0: i32) -> (i32, i32) {
    %c0_i32 = arith.constant 0 : i32
    %c0_i32_0 = arith.constant 0 : i32
    %c0_i32_1 = arith.constant 0 : i32
    return %c0_i32, %c0_i32_0 : i32, i32
  }
  func.func @transform_7(%arg0: i32) -> (i32, i32) {
    %c0_i32 = arith.constant 0 : i32
    %c0_i32_0 = arith.constant 0 : i32
    %c0_i32_1 = arith.constant 0 : i32
    return %c0_i32, %c0_i32_0 : i32, i32
  }
  func.func @transform_8(%arg0: i32) -> (i32, i32) {
    %c0_i32 = arith.constant 0 : i32
    %c0_i32_0 = arith.constant 0 : i32
    %c0_i32_1 = arith.constant 0 : i32
    return %c0_i32, %c0_i32_0 : i32, i32
  }
  func.func @transform_9(%arg0: i32) -> (i32, i32) {
    %c0_i32 = arith.constant 0 : i32
    %c0_i32_0 = arith.constant 0 : i32
    %c0_i32_1 = arith.constant 0 : i32
    return %c0_i32, %c0_i32_0 : i32, i32
  }
  func.func @transform_10(%arg0: i32) -> (i32, i32, i32) {
    %c0_i32 = arith.constant 0 : i32
    %c0_i32_0 = arith.constant 0 : i32
    %c0_i32_1 = arith.constant 0 : i32
    return %arg0, %c0_i32, %c0_i32_0 : i32, i32, i32
  }
}

</mosaic_0001>

<llo_original>
// kernel: tpu_custom_call.1
$region0: #{tpu_custom_call.1}
  #allocation0 [shape = 'u32[]', space=smem, size = 0x4, offset = 0x4, fixed_abs, tag = 'smem constant byte address 0x4 - core index']
  #allocation1 [shape = 'u32[72,128]{1,0:T(1,128)}', space=vmem, size = 0x9000, scoped, tag = 'internal scratch']
  %s0 = inlined_call_operand.vmem [shape: f32[16,16], index: 0, kind: input, shape index: {}]
  %s1 = inlined_call_operand.vmem [shape: f32[2,16], index: 1, kind: input, shape index: {}]
  %s2 = inlined_call_operand.vmem [shape: f32[2,16], index: 2, kind: input, shape index: {}]
  %s3 = inlined_call_operand.vmem [shape: f32[16,1], index: 3, kind: input, shape index: {}]
  %s4 = inlined_call_operand.vmem [shape: f32[16,36], index: 4, kind: input, shape index: {}]
  %s5 = inlined_call_operand.vmem [shape: f32[16,36], index: 5, kind: input, shape index: {}]
  %s6 = inlined_call_operand.vmem [shape: f32[1,36], index: 6, kind: input, shape index: {}]
  %s7 = inlined_call_operand.vmem [shape: f32[36,6], index: 7, kind: input, shape index: {}]
  %s8 = inlined_call_operand.vmem [shape: f32[1,6], index: 8, kind: input, shape index: {}]
  %s9 = inlined_call_operand.vmem [shape: f32[1,6], index: 9, kind: input, shape index: {}]
  %s10 = inlined_call_operand.hbm [shape: f32[1,1,1], index: 10, kind: output, shape index: {}]
  %s11 = sld [smem:[#allocation0]]
  $region50: #{tpu_custom_call.1} parent=0
    _
  %s13 = ssub.s32 1, %s11
  %s14 = scalar_select 0, %s13, %s11
  $region1: #{tpu_custom_call.1} parent=0
    #allocation2 [shape = 'u8[512]{0}', space=vmem, size = 0x400, scoped, tag = 'output window, operand 0, single buffered']
    #allocation3 [shape = 's32[1]{0}', space=sflag, size = 0x4, scoped, tag = 'scoped memory for tpu_custom_call.1']
    %15 = vsyncpa [#allocation3], 0
    // Predicated region
    $region2: #{tpu_custom_call.1} parent=1 // pred_check
      _
    $region3: #{tpu_custom_call.1} parent=1 // pred_check_branch
      %17 = sbr.rel (0) target = $region5
    $region4: #{tpu_custom_call.1} parent=1 // pred_region
      _
    $region5: #{tpu_custom_call.1} parent=1 // pred_fallthru
      _
    // Predicated region
    $region6: #{tpu_custom_call.1} parent=1 // pred_check
      _
    $region7: #{tpu_custom_call.1} parent=1 // pred_check_branch
      %19 = sbr.rel (0) target = $region9
    $region8: #{tpu_custom_call.1} parent=1 // pred_region
      _
    $region9: #{tpu_custom_call.1} parent=1 // pred_fallthru
      _
    // Predicated region
    $region10: #{tpu_custom_call.1} parent=1 // pred_check
      _
    $region11: #{tpu_custom_call.1} parent=1 // pred_check_branch
      %21 = sbr.rel (0) target = $region13
    $region12: #{tpu_custom_call.1} parent=1 // pred_region
      _
    $region13: #{tpu_custom_call.1} parent=1 // pred_fallthru
      _
    // Predicated region
    $region14: #{tpu_custom_call.1} parent=1 // pred_check
      _
    $region15: #{tpu_custom_call.1} parent=1 // pred_check_branch
      %23 = sbr.rel (0) target = $region17
    $region16: #{tpu_custom_call.1} parent=1 // pred_region
      _
    $region17: #{tpu_custom_call.1} parent=1 // pred_fallthru
      _
    // Predicated region
    $region18: #{tpu_custom_call.1} parent=1 // pred_check
      _
    $region19: #{tpu_custom_call.1} parent=1 // pred_check_branch
      %25 = sbr.rel (0) target = $region21
    $region20: #{tpu_custom_call.1} parent=1 // pred_region
      _
    $region21: #{tpu_custom_call.1} parent=1 // pred_fallthru
      _
    // Predicated region
    $region22: #{tpu_custom_call.1} parent=1 // pred_check
      _
    $region23: #{tpu_custom_call.1} parent=1 // pred_check_branch
      %27 = sbr.rel (0) target = $region25
    $region24: #{tpu_custom_call.1} parent=1 // pred_region
      _
    $region25: #{tpu_custom_call.1} parent=1 // pred_fallthru
      _
    // Predicated region
    $region26: #{tpu_custom_call.1} parent=1 // pred_check
      _
    $region27: #{tpu_custom_call.1} parent=1 // pred_check_branch
      %29 = sbr.rel (0) target = $region29
    $region28: #{tpu_custom_call.1} parent=1 // pred_region
      _
    $region29: #{tpu_custom_call.1} parent=1 // pred_fallthru
      _
    // Predicated region
    $region30: #{tpu_custom_call.1} parent=1 // pred_check
      _
    $region31: #{tpu_custom_call.1} parent=1 // pred_check_branch
      %31 = sbr.rel (0) target = $region33
    $region32: #{tpu_custom_call.1} parent=1 // pred_region
      _
    $region33: #{tpu_custom_call.1} parent=1 // pred_fallthru
      _
    // Predicated region
    $region34: #{tpu_custom_call.1} parent=1 // pred_check
      _
    $region35: #{tpu_custom_call.1} parent=1 // pred_check_branch
      %33 = sbr.rel (0) target = $region37
    $region36: #{tpu_custom_call.1} parent=1 // pred_region
      _
    $region37: #{tpu_custom_call.1} parent=1 // pred_fallthru
      _
    // Predicated region
    $region38: #{tpu_custom_call.1} parent=1 // pred_check
      _
    $region39: #{tpu_custom_call.1} parent=1 // pred_check_branch
      %35 = sbr.rel (0) target = $region41
    $region40: #{tpu_custom_call.1} parent=1 // pred_region
      _
    $region41: #{tpu_custom_call.1} parent=1 // pred_fallthru
      _
    %v36 = vld [vmem:[%s4] sm:$0xff]
    %v37 = vld [vmem:[%s4 + $0x8] sm:$0xff]
    %v38 = vld [vmem:[%s5] sm:$0xff]
    %v39 = vld [vmem:[%s5 + $0x8] sm:$0xff]
    %v40 = vld [vmem:[%s6] sm:$0x1]
    %v41 = vld [vmem:[%s7] sm:$0xff]
    %v42 = vld [vmem:[%s7 + $0x8] sm:$0xff]
    %v43 = vld [vmem:[%s7 + $0x10] sm:$0xff]
    %v44 = vld [vmem:[%s7 + $0x18] sm:$0xff]
    %v45 = vld [vmem:[%s7 + $0x20] sm:$0xf]
    %v46 = vld [vmem:[%s8] sm:$0x1]
    %v47 = vld [vmem:[%s9] sm:$0x1]
    %v48 = vld [vmem:[%s0] sm:$0xff]
    %v49 = vld [vmem:[%s0 + $0x8] sm:$0xff]
    %v50 = vld [vmem:[%s1] sm:$0x3]
    %v51 = vld [vmem:[%s2] sm:$0x3]
    %vm52 = vcmask 130048
    %v54 = vsel %vm52, %v51, 0
    %56 = vmatpush.msra.mxu0 0.0
    %57 = vmatpush.msra.mxu0 0.0
    %58 = vmatpush.msra.mxu0 0.0
    %59 = vmatpush.msra.mxu0 0.0
    %60 = vmatpush.msra.mxu0 0.0
    %61 = vmatpush.msra.mxu0 0.0
    %62 = vmatpush.msra.mxu0 0.0
    %63 = vmatpush.msra.mxu0 0.0
    %64 = vmatpush.msra.mxu0 0.0
    %65 = vmatpush.msra.mxu0 0.0
    %66 = vmatpush.msra.mxu0 0.0
    %67 = vmatpush.msra.mxu0 0.0
    %68 = vmatpush.msra.mxu0 0.0
    %69 = vmatpush.msra.mxu0 0.0
    %70 = vmatpush.msra.mxu0 %v39
    %71 = vmatpush.msra.mxu0 %v38
    %72 = vmatmul.f32.gmra.mxu0 %v54
    %v73 = vpop.f32.mrf.mxu0
    %v74 = vadd.f32 0.0, %v73
    %75 = vdwg.mxu0
    %v77 = vsel %vm52, %v50, 0
    %79 = vmatpush.msra.mxu0 0.0
    %80 = vmatpush.msra.mxu0 0.0
    %81 = vmatpush.msra.mxu0 0.0
    %82 = vmatpush.msra.mxu0 0.0
    %83 = vmatpush.msra.mxu0 0.0
    %84 = vmatpush.msra.mxu0 0.0
    %85 = vmatpush.msra.mxu0 0.0
    %86 = vmatpush.msra.mxu0 0.0
    %87 = vmatpush.msra.mxu0 0.0
    %88 = vmatpush.msra.mxu0 0.0
    %89 = vmatpush.msra.mxu0 0.0
    %90 = vmatpush.msra.mxu0 0.0
    %91 = vmatpush.msra.mxu0 0.0
    %92 = vmatpush.msra.mxu0 0.0
    %93 = vmatpush.msra.mxu0 %v37
    %94 = vmatpush.msra.mxu0 %v36
    %95 = vmatmul.f32.gmra.mxu0 %v77
    %v96 = vpop.f32.mrf.mxu0
    %v97 = vadd.f32 %v74, %v96
    %98 = vdwg.mxu0
    %v100 = vperm.slane %v40, 0
    %v102 = vadd.f32 %v97, %v100
    %v103 = vmax.f32 %v102, 0.0
    %v105 = vperm.slane %v46, 0
    %vm107 = vcmask 293888
    %v109 = vsel %vm107, %v103, 0
    %vm111 = vcmask 1043456
    %v113 = vsel %vm111, %v45, 0
    %115 = vmatpush.msra.mxu0 0.0
    %116 = vmatpush.msra.mxu0 0.0
    %117 = vmatpush.msra.mxu0 0.0
    %118 = vmatpush.msra.mxu0 0.0
    %119 = vmatpush.msra.mxu0 0.0
    %120 = vmatpush.msra.mxu0 0.0
    %121 = vmatpush.msra.mxu0 0.0
    %122 = vmatpush.msra.mxu0 0.0
    %123 = vmatpush.msra.mxu0 0.0
    %124 = vmatpush.msra.mxu0 0.0
    %125 = vmatpush.msra.mxu0 0.0
    %126 = vmatpush.msra.mxu0 %v113
    %127 = vmatpush.msra.mxu0 %v44
    %128 = vmatpush.msra.mxu0 %v43
    %129 = vmatpush.msra.mxu0 %v42
    %130 = vmatpush.msra.mxu0 %v41
    %131 = vmatmul.f32.gmra.mxu0 %v109
    %v132 = vpop.f32.mrf.mxu0
    %v133 = vadd.f32 %v105, %v132
    %134 = vdwg.mxu0
    %v135 = vmax.f32 %v133, 0.0
    %v137 = vperm.slane %v47, 0
    %v139 = vmul.f32 %v135, %v137
    %vm140 = vcmask 41984
    %v141 = vsel %vm140, %v139, 0.0
    %142 = vadd.xlane.f32.xlu0 %v141
    %v143 = vpop.xlane.xlu0 %142
    %v145 = vrot.slane %v74, 1
    %v146 = vperm.slane %v74, 0
    %v147 = vperm.slane %v145, 0
    %v151 = vsel %vm52, %v48, 0
    %v154 = vsel %vm52, %v49, 0
    %156 = vmatpush.msra.mxu0 0.0
    %157 = vmatpush.msra.mxu0 0.0
    %158 = vmatpush.msra.mxu0 0.0
    %159 = vmatpush.msra.mxu0 0.0
    %160 = vmatpush.msra.mxu0 0.0
    %161 = vmatpush.msra.mxu0 0.0
    %162 = vmatpush.msra.mxu0 0.0
    %163 = vmatpush.msra.mxu0 0.0
    %164 = vmatpush.msra.mxu0 0.0
    %165 = vmatpush.msra.mxu0 0.0
    %166 = vmatpush.msra.mxu0 0.0
    %167 = vmatpush.msra.mxu0 0.0
    %168 = vmatpush.msra.mxu0 0.0
    %169 = vmatpush.msra.mxu0 0.0
    %170 = vmatpush.msra.mxu0 %v37
    %171 = vmatpush.msra.mxu0 %v36
    %172 = vmatmul.f32.gmra.mxu0 %v151
    %v173 = vpop.f32.mrf.mxu0
    %v174 = vadd.f32 %v146, %v173
    %175 = vmatmul.f32.gmra.mxu0 %v154
    %v176 = vpop.f32.mrf.mxu0
    %v177 = vadd.f32 %v147, %v176
    %178 = vdwg.mxu0
    %v179 = vadd.f32 %v174, %v100
    %v180 = vadd.f32 %v177, %v100
    %v181 = vmax.f32 %v179, 0.0
    %v182 = vmax.f32 %v180, 0.0
    %v184 = vsel %vm107, %v181, 0
    %v187 = vsel %vm107, %v182, 0
    %189 = vmatpush.msra.mxu0 0.0
    %190 = vmatpush.msra.mxu0 0.0
    %191 = vmatpush.msra.mxu0 0.0
    %192 = vmatpush.msra.mxu0 0.0
    %193 = vmatpush.msra.mxu0 0.0
    %194 = vmatpush.msra.mxu0 0.0
    %195 = vmatpush.msra.mxu0 0.0
    %196 = vmatpush.msra.mxu0 0.0
    %197 = vmatpush.msra.mxu0 0.0
    %198 = vmatpush.msra.mxu0 0.0
    %199 = vmatpush.msra.mxu0 0.0
    %200 = vmatpush.msra.mxu0 %v113
    %201 = vmatpush.msra.mxu0 %v44
    %202 = vmatpush.msra.mxu0 %v43
    %203 = vmatpush.msra.mxu0 %v42
    %204 = vmatpush.msra.mxu0 %v41
    %205 = vmatmul.f32.gmra.mxu0 %v184
    %v206 = vpop.f32.mrf.mxu0
    %v207 = vadd.f32 %v105, %v206
    %208 = vmatmul.f32.gmra.mxu0 %v187
    %v209 = vpop.f32.mrf.mxu0
    %v210 = vadd.f32 %v105, %v209
    %211 = vdwg.mxu0
    %v212 = vmax.f32 %v207, 0.0
    %v213 = vmax.f32 %v210, 0.0
    %v214 = vmul.f32 %v212, %v137
    %v215 = vmul.f32 %v213, %v137
    %vm216 = vcmask 48128
    %v217 = vsel %vm216, %v214, 0.0
    %218 = vadd.xlane.f32.xlu0 %v217
    %v219 = vpop.xlane.xlu0 %218
    %v220 = vsel %vm216, %v215, 0.0
    %221 = vadd.xlane.f32.xlu0 %v220
    %v222 = vpop.xlane.xlu0 %221
    %v224 = vperm.slane %v143, 0
    %v225 = vperm.slane %v143, 1
    %v228 = vsub.f32 %v219, %v224
    %v229 = vsub.f32 %v222, %v225
    %v230 = vmax.f32 %v228, 0.0
    %v231 = vmax.f32 %v229, 0.0
    %v232 = vld [vmem:[%s3] sm:$0xff]
    %v233 = vld [vmem:[%s3 + $0x8] sm:$0xff]
    %v234 = vmul.f32 %v230, %v232
    %v235 = vmul.f32 %v231, %v233
    %vm236 = vcmask 7168
    %v237 = vsel %vm236, %v234, 0.0
    %v238 = vsel %vm236, %v235, 0.0
    %v239 = vadd.f32 %v237, %v238
    %v240 = vrot.slane %v239, 4
    %v241 = vadd.f32 %v239, %v240
    %v242 = vrot.slane %v241, 2
    %v243 = vadd.f32 %v241, %v242
    %v244 = vrot.slane %v243, 1
    %v245 = vadd.f32 %v243, %v244
    %vm246 = vcmask 0
    %247 = vst.msk [vmem:[#allocation2] sm:$0x1] %vm246, %v245
    // Predicated region
    $region42: #{tpu_custom_call.1} parent=1 // pred_check
      _
    $region43: #{tpu_custom_call.1} parent=1 // pred_check_branch
      %249 = sbr.rel (0) target = $region45
    $region44: #{tpu_custom_call.1} parent=1 // pred_region
      %251 = vsyncadd [#allocation3], 0
      %s253 = sshll.u32 [#allocation2], 4
      %s254 = int_to_ptr.vmem [resolvable:$true] %s253
      %s255 = sshll.u32 %s10, 4
      %s256 = int_to_ptr.hbm [resolvable:$true] %s255
      %258 = dma.vmem_to_hbm [thread:$0]  %s254, 16, %s256, [#allocation3]
    $region45: #{tpu_custom_call.1} parent=1 // pred_fallthru
      _
    // Predicated region
    $region46: #{tpu_custom_call.1} parent=1 // pred_check
      _
    $region47: #{tpu_custom_call.1} parent=1 // pred_check_branch
      %260 = sbr.rel (0) target = $region49
    $region48: #{tpu_custom_call.1} parent=1 // pred_region
      %262 = dma.done [#allocation3], 16
    $region49: #{tpu_custom_call.1} parent=1 // pred_fallthru
      _
    %263 = vsyncpa [#allocation3], 1

</llo_original>
